<compile_context>
chip_gen: v7x
topology: tpu7x:2x2x1
jax: 0.10.0
libtpu: 0.0.40
codegen_flags: <defaults>
</compile_context>

<pallas_src>
import functools

import jax
import jax.numpy as jnp
from jax import lax
from jax.experimental import pallas as pl
from jax.experimental.pallas import tpu as pltpu

LN_EPS = 1e-5  # PyTorch nn.LayerNorm default
SUBLANE = 8


def _round_up(n, m):
    return (n + m - 1) // m * m


def _layernorm(h, gamma, beta):
    """Plain LayerNorm over the (unpadded) last axis, f32 math."""
    mu = jnp.mean(h, axis=-1, keepdims=True)
    d = h - mu
    var = jnp.mean(d * d, axis=-1, keepdims=True)
    return d * lax.rsqrt(var + LN_EPS) * gamma + beta


def _actor_kernel(x_ref, w1_ref, w2_ref, wa_ref, vec_ref, o_ref, *,
                  obs_dim, hidden, act_dim):
    bf16 = jnp.bfloat16
    x = x_ref[...]  # (tb, obs_dim) f32

    # One packed slab holding all tiny per-feature parameter rows (f32).
    vec = vec_ref[...]
    gf, bf_ = vec[0:1, :obs_dim], vec[1:2, :obs_dim]
    b1, g1, be1 = vec[2:3, :hidden], vec[3:4, :hidden], vec[4:5, :hidden]
    b2, g2, be2 = vec[5:6, :hidden], vec[6:7, :hidden], vec[7:8, :hidden]
    ba = vec[8:9, :act_dim]

    # MLPBase.feature_norm
    h = _layernorm(x, gf, bf_)

    # MLPLayer.fc1: Linear -> ReLU -> LayerNorm  (bf16 operands, f32 accumulate)
    h = jnp.dot(h.astype(bf16), w1_ref[...],
                preferred_element_type=jnp.float32) + b1
    h = jnp.maximum(h, 0.0)
    h = _layernorm(h, g1, be1)

    # MLPLayer.fc2 (layer_N = 1): Linear -> ReLU -> LayerNorm
    h = jnp.dot(h.astype(bf16), w2_ref[...],
                preferred_element_type=jnp.float32) + b2
    h = jnp.maximum(h, 0.0)
    h = _layernorm(h, g2, be2)

    # ACTLayer.action_out + Sigmoid
    a = jnp.dot(h.astype(bf16), wa_ref[...],
                preferred_element_type=jnp.float32) + ba
    o_ref[...] = jax.nn.sigmoid(a)


def maddpg_actor_forward(x, params, *, batch_tile=1024):
    """x: (B, obs_dim) float32; params: dict of arrays. Returns (B, act_dim)."""
    B, obs_dim = x.shape
    hidden = params["w1"].shape[1]
    act_dim = params["wa"].shape[1]

    f32 = jnp.float32
    bf16 = jnp.bfloat16

    # Balanced batch tiling: at most ~n_steps*8 padded rows; keep >= 2 grid
    # steps for non-trivial batches so v7x's second TensorCore is used.
    n_steps = max(1, pl.cdiv(B, batch_tile))
    if n_steps == 1 and B > SUBLANE:
        n_steps = 2
    tb = _round_up(pl.cdiv(B, n_steps), SUBLANE)
    bp = n_steps * tb

    xp = x.astype(f32)
    if bp != B:
        # Only the batch rows are padded (small, and only when B % tb != 0);
        # feature dims are never padded so there is no 8-16x inflated HBM pass.
        xp = jnp.zeros((bp, obs_dim), f32).at[:B].set(xp)

    # Weight slabs live in HBM as bf16 (halves traffic & VMEM residency).
    w1 = params["w1"].astype(bf16)
    w2 = params["w2"].astype(bf16)
    wa = params["wa"].astype(bf16)

    # Packed (16, P) f32 slab of the nine tiny parameter rows -> single DMA.
    p = max(obs_dim, hidden, act_dim)

    def _row(v):
        v = v.reshape(1, -1).astype(f32)
        return jnp.zeros((1, p), f32).at[:, : v.shape[-1]].set(v)

    rows = [
        _row(params["gf"]), _row(params["bf"]),
        _row(params["b1"]), _row(params["g1"]), _row(params["be1"]),
        _row(params["b2"]), _row(params["g2"]), _row(params["be2"]),
        _row(params["ba"]),
    ]
    vec = jnp.concatenate(rows + [jnp.zeros((16 - len(rows), p), f32)], axis=0)

    kernel = functools.partial(
        _actor_kernel, obs_dim=obs_dim, hidden=hidden, act_dim=act_dim)

    # VMEM budget: resident bf16 weights + f32 param slab + double-buffered
    # x/out blocks + activation headroom, with 2x margin; clamp to
    # [32 MiB, 64 MiB] (v7x physical VMEM is 64 MiB; v5e default scoped is 16).
    resident = 2 * (obs_dim * hidden + hidden * hidden + hidden * act_dim) + 4 * 16 * p
    streamed = 4 * 2 * tb * (obs_dim + act_dim)
    work = 4 * 4 * tb * max(obs_dim, hidden, act_dim)
    vmem_bytes = int(min(max(2 * (resident + streamed + work), 32 << 20), 64 << 20))

    weight_bytes = 2 * (obs_dim * hidden + hidden * hidden + hidden * act_dim)
    cost = pl.CostEstimate(
        flops=2 * B * (obs_dim * hidden + hidden * hidden + hidden * act_dim),
        transcendentals=B * act_dim,
        bytes_accessed=4 * bp * (obs_dim + act_dim) + weight_bytes + 4 * 16 * p,
    )

    out = pl.pallas_call(
        kernel,
        out_shape=jax.ShapeDtypeStruct((bp, act_dim), f32),
        grid=(n_steps,),
        in_specs=[
            pl.BlockSpec((tb, obs_dim), lambda i: (i, 0)),       # x: streamed per batch tile
            pl.BlockSpec((obs_dim, hidden), lambda i: (0, 0)),   # w1: VMEM-resident (bf16)
            pl.BlockSpec((hidden, hidden), lambda i: (0, 0)),    # w2: VMEM-resident (bf16)
            pl.BlockSpec((hidden, act_dim), lambda i: (0, 0)),   # wa: VMEM-resident (bf16)
            pl.BlockSpec((16, p), lambda i: (0, 0)),             # packed biases / LN params
        ],
        out_specs=pl.BlockSpec((tb, act_dim), lambda i: (i, 0)),
        compiler_params=pltpu.CompilerParams(
            dimension_semantics=("parallel",),
            vmem_limit_bytes=vmem_bytes),
        cost_estimate=cost,
    )(xp, w1, w2, wa, vec)

    return out[:B] if bp != B else out


def _orthogonal(key, shape, gain):
    # Deterministic orthogonal init (matches nn.init.orthogonal_ semantics).
    rows, cols = shape
    n = max(rows, cols)
    a = jax.random.normal(key, (n, n), dtype=jnp.float32)
    q, r = jnp.linalg.qr(a)
    q = q * jnp.sign(jnp.diag(r))
    return gain * q[:rows, :cols]


def make_params(key, obs_dim, hidden, act_dim, gain2=0.01):
    ks = jax.random.split(key, 3)
    sqrt2 = float(jnp.sqrt(2.0))
    return {
        # feature_norm (LayerNorm init: gamma=1, beta=0)
        "gf": jnp.ones((1, obs_dim), jnp.float32),
        "bf": jnp.zeros((1, obs_dim), jnp.float32),
        # fc1
        "w1": _orthogonal(ks[0], (obs_dim, hidden), sqrt2),
        "b1": jnp.zeros((1, hidden), jnp.float32),
        "g1": jnp.ones((1, hidden), jnp.float32),
        "be1": jnp.zeros((1, hidden), jnp.float32),
        # fc2
        "w2": _orthogonal(ks[1], (hidden, hidden), sqrt2),
        "b2": jnp.zeros((1, hidden), jnp.float32),
        "g2": jnp.ones((1, hidden), jnp.float32),
        "be2": jnp.zeros((1, hidden), jnp.float32),
        # action_out (gain2)
        "wa": _orthogonal(ks[2], (hidden, act_dim), gain2),
        "ba": jnp.zeros((1, act_dim), jnp.float32),
    }


def _reference(x, p):
    # Pure-JAX f32 reference for sanity checking.
    def ln(h, g, b):
        mu = h.mean(-1, keepdims=True)
        var = ((h - mu) ** 2).mean(-1, keepdims=True)
        return (h - mu) / jnp.sqrt(var + LN_EPS) * g + b

    h = ln(x, p["gf"], p["bf"])
    h = ln(jnp.maximum(h @ p["w1"] + p["b1"], 0.0), p["g1"], p["be1"])
    h = ln(jnp.maximum(h @ p["w2"] + p["b2"], 0.0), p["g2"], p["be2"])
    return jax.nn.sigmoid(h @ p["wa"] + p["ba"])


if __name__ == "__main__":
    key = jax.random.PRNGKey(0)
    k_x, k_p, k_x2 = jax.random.split(key, 3)

    batch, obs_dim, hidden, act_dim = 8, 16, 32, 8
    params = make_params(k_p, obs_dim, hidden, act_dim)

    # Case 1: tiny batch, single grid step.
    x = jax.random.normal(k_x, (batch, obs_dim), dtype=jnp.float32)
    actions = jax.block_until_ready(maddpg_actor_forward(x, params))
    ref = _reference(x, params)
    assert actions.shape == (batch, act_dim)
    # bf16 MXU operands (f32 accumulate) -> relaxed tolerance vs. f32 reference.
    assert jnp.allclose(actions, ref, atol=2e-2, rtol=2e-2), "mismatch vs reference (case 1)"

    # Case 2: batch not divisible by the tile -> 2 grid steps + row padding path.
    batch2 = 20
    x2 = jax.random.normal(k_x2, (batch2, obs_dim), dtype=jnp.float32)
    actions2 = jax.block_until_ready(maddpg_actor_forward(x2, params))
    ref2 = _reference(x2, params)
    assert actions2.shape == (batch2, act_dim)
    assert jnp.allclose(actions2, ref2, atol=2e-2, rtol=2e-2), "mismatch vs reference (case 2)"

    print("KERNEL_OK")
</pallas_src>

<mosaic_0001>
module attributes {stable_mosaic.version = 11 : i64} {
  func.func @_actor_kernel(%arg0: i32, %arg1: memref<8x16xf32, #tpu.memory_space<vmem>>, %arg2: memref<16x32xbf16, #tpu.memory_space<vmem>>, %arg3: memref<32x32xbf16, #tpu.memory_space<vmem>>, %arg4: memref<32x8xbf16, #tpu.memory_space<vmem>>, %arg5: memref<16x32xf32, #tpu.memory_space<vmem>>, %arg6: memref<8x8xf32, #tpu.memory_space<vmem>>) attributes {dimension_semantics = [#tpu.dimension_semantics<parallel>], iteration_bounds = array<i64: 1>, scalar_prefetch = 0 : i64, scratch_operands = 0 : i64, tpu.core_type = #tpu.core_type<tc>, window_params = [{transform_indices = @transform_0, window_bounds = array<i64: 8, 16>}, {pipeline_mode = #tpu.pipeline_mode<synchronous>, transform_indices = @transform_1, window_bounds = array<i64: 16, 32>}, {pipeline_mode = #tpu.pipeline_mode<synchronous>, transform_indices = @transform_2, window_bounds = array<i64: 32, 32>}, {pipeline_mode = #tpu.pipeline_mode<synchronous>, transform_indices = @transform_3, window_bounds = array<i64: 32, 8>}, {pipeline_mode = #tpu.pipeline_mode<synchronous>, transform_indices = @transform_4, window_bounds = array<i64: 16, 32>}, {transform_indices = @transform_5, window_bounds = array<i64: 8, 8>}]} {
    %c0 = arith.constant 0 : index
    %c0_0 = arith.constant 0 : index
    %0 = vector.load %arg1[%c0, %c0_0] : memref<8x16xf32, #tpu.memory_space<vmem>>, vector<8x16xf32>
    %c0_1 = arith.constant 0 : index
    %c0_2 = arith.constant 0 : index
    %1 = vector.load %arg5[%c0_1, %c0_2] : memref<16x32xf32, #tpu.memory_space<vmem>>, vector<16x32xf32>
    %2 = vector.extract_strided_slice %1 {offsets = [0, 0], sizes = [1, 16], strides = [1, 1]} : vector<16x32xf32> to vector<1x16xf32>
    %3 = vector.extract_strided_slice %1 {offsets = [1, 0], sizes = [1, 16], strides = [1, 1]} : vector<16x32xf32> to vector<1x16xf32>
    %4 = vector.extract_strided_slice %1 {offsets = [2, 0], sizes = [1, 32], strides = [1, 1]} : vector<16x32xf32> to vector<1x32xf32>
    %5 = vector.extract_strided_slice %1 {offsets = [3, 0], sizes = [1, 32], strides = [1, 1]} : vector<16x32xf32> to vector<1x32xf32>
    %6 = vector.extract_strided_slice %1 {offsets = [4, 0], sizes = [1, 32], strides = [1, 1]} : vector<16x32xf32> to vector<1x32xf32>
    %7 = vector.extract_strided_slice %1 {offsets = [5, 0], sizes = [1, 32], strides = [1, 1]} : vector<16x32xf32> to vector<1x32xf32>
    %8 = vector.extract_strided_slice %1 {offsets = [6, 0], sizes = [1, 32], strides = [1, 1]} : vector<16x32xf32> to vector<1x32xf32>
    %9 = vector.extract_strided_slice %1 {offsets = [7, 0], sizes = [1, 32], strides = [1, 1]} : vector<16x32xf32> to vector<1x32xf32>
    %10 = vector.extract_strided_slice %1 {offsets = [8, 0], sizes = [1, 8], strides = [1, 1]} : vector<16x32xf32> to vector<1x8xf32>
    %cst = arith.constant dense<0.000000e+00> : vector<8xf32>
    %11 = vector.multi_reduction <add>, %0, %cst [1] : vector<8x16xf32> to vector<8xf32>
    %12 = vector.shape_cast %11 : vector<8xf32> to vector<8x1xf32>
    %cst_3 = arith.constant 1.600000e+01 : f32
    %13 = vector.broadcast %cst_3 : f32 to vector<8x1xf32>
    %14 = arith.divf %12, %13 : vector<8x1xf32>
    %15 = vector.broadcast %14 : vector<8x1xf32> to vector<8x16xf32>
    %16 = arith.subf %0, %15 : vector<8x16xf32>
    %17 = arith.mulf %16, %16 : vector<8x16xf32>
    %cst_4 = arith.constant dense<0.000000e+00> : vector<8xf32>
    %18 = vector.multi_reduction <add>, %17, %cst_4 [1] : vector<8x16xf32> to vector<8xf32>
    %19 = vector.shape_cast %18 : vector<8xf32> to vector<8x1xf32>
    %cst_5 = arith.constant 1.600000e+01 : f32
    %20 = vector.broadcast %cst_5 : f32 to vector<8x1xf32>
    %21 = arith.divf %19, %20 : vector<8x1xf32>
    %cst_6 = arith.constant 9.99999974E-6 : f32
    %22 = vector.broadcast %cst_6 : f32 to vector<8x1xf32>
    %23 = arith.addf %21, %22 : vector<8x1xf32>
    %24 = math.rsqrt %23 : vector<8x1xf32>
    %25 = vector.broadcast %24 : vector<8x1xf32> to vector<8x16xf32>
    %26 = arith.mulf %16, %25 : vector<8x16xf32>
    %27 = vector.broadcast %2 : vector<1x16xf32> to vector<8x16xf32>
    %28 = arith.mulf %26, %27 : vector<8x16xf32>
    %29 = vector.broadcast %3 : vector<1x16xf32> to vector<8x16xf32>
    %30 = arith.addf %28, %29 : vector<8x16xf32>
    %31 = arith.truncf %30 : vector<8x16xf32> to vector<8x16xbf16>
    %c0_7 = arith.constant 0 : index
    %c0_8 = arith.constant 0 : index
    %32 = vector.load %arg2[%c0_7, %c0_8] : memref<16x32xbf16, #tpu.memory_space<vmem>>, vector<16x32xbf16>
    %cst_9 = arith.constant dense<0.000000e+00> : vector<8x32xf32>
    %33 = tpu.matmul %31, %32, %cst_9 {dimension_numbers = #tpu.dot_dimension_numbers<[1], [0], [0], [1], [0, 0, 1, 1], [], []>} : vector<8x16xbf16>, vector<16x32xbf16>, vector<8x32xf32> -> vector<8x32xf32>
    %34 = vector.broadcast %4 : vector<1x32xf32> to vector<8x32xf32>
    %35 = arith.addf %33, %34 : vector<8x32xf32>
    %cst_10 = arith.constant 0.000000e+00 : f32
    %36 = vector.broadcast %cst_10 : f32 to vector<8x32xf32>
    %37 = arith.maximumf %35, %36 : vector<8x32xf32>
    %cst_11 = arith.constant dense<0.000000e+00> : vector<8xf32>
    %38 = vector.multi_reduction <add>, %37, %cst_11 [1] : vector<8x32xf32> to vector<8xf32>
    %39 = vector.shape_cast %38 : vector<8xf32> to vector<8x1xf32>
    %cst_12 = arith.constant 3.200000e+01 : f32
    %40 = vector.broadcast %cst_12 : f32 to vector<8x1xf32>
    %41 = arith.divf %39, %40 : vector<8x1xf32>
    %42 = vector.broadcast %41 : vector<8x1xf32> to vector<8x32xf32>
    %43 = arith.subf %37, %42 : vector<8x32xf32>
    %44 = arith.mulf %43, %43 : vector<8x32xf32>
    %cst_13 = arith.constant dense<0.000000e+00> : vector<8xf32>
    %45 = vector.multi_reduction <add>, %44, %cst_13 [1] : vector<8x32xf32> to vector<8xf32>
    %46 = vector.shape_cast %45 : vector<8xf32> to vector<8x1xf32>
    %cst_14 = arith.constant 3.200000e+01 : f32
    %47 = vector.broadcast %cst_14 : f32 to vector<8x1xf32>
    %48 = arith.divf %46, %47 : vector<8x1xf32>
    %cst_15 = arith.constant 9.99999974E-6 : f32
    %49 = vector.broadcast %cst_15 : f32 to vector<8x1xf32>
    %50 = arith.addf %48, %49 : vector<8x1xf32>
    %51 = math.rsqrt %50 : vector<8x1xf32>
    %52 = vector.broadcast %51 : vector<8x1xf32> to vector<8x32xf32>
    %53 = arith.mulf %43, %52 : vector<8x32xf32>
    %54 = vector.broadcast %5 : vector<1x32xf32> to vector<8x32xf32>
    %55 = arith.mulf %53, %54 : vector<8x32xf32>
    %56 = vector.broadcast %6 : vector<1x32xf32> to vector<8x32xf32>
    %57 = arith.addf %55, %56 : vector<8x32xf32>
    %58 = arith.truncf %57 : vector<8x32xf32> to vector<8x32xbf16>
    %c0_16 = arith.constant 0 : index
    %c0_17 = arith.constant 0 : index
    %59 = vector.load %arg3[%c0_16, %c0_17] : memref<32x32xbf16, #tpu.memory_space<vmem>>, vector<32x32xbf16>
    %cst_18 = arith.constant dense<0.000000e+00> : vector<8x32xf32>
    %60 = tpu.matmul %58, %59, %cst_18 {dimension_numbers = #tpu.dot_dimension_numbers<[1], [0], [0], [1], [0, 0, 1, 1], [], []>} : vector<8x32xbf16>, vector<32x32xbf16>, vector<8x32xf32> -> vector<8x32xf32>
    %61 = vector.broadcast %7 : vector<1x32xf32> to vector<8x32xf32>
    %62 = arith.addf %60, %61 : vector<8x32xf32>
    %cst_19 = arith.constant 0.000000e+00 : f32
    %63 = vector.broadcast %cst_19 : f32 to vector<8x32xf32>
    %64 = arith.maximumf %62, %63 : vector<8x32xf32>
    %cst_20 = arith.constant dense<0.000000e+00> : vector<8xf32>
    %65 = vector.multi_reduction <add>, %64, %cst_20 [1] : vector<8x32xf32> to vector<8xf32>
    %66 = vector.shape_cast %65 : vector<8xf32> to vector<8x1xf32>
    %cst_21 = arith.constant 3.200000e+01 : f32
    %67 = vector.broadcast %cst_21 : f32 to vector<8x1xf32>
    %68 = arith.divf %66, %67 : vector<8x1xf32>
    %69 = vector.broadcast %68 : vector<8x1xf32> to vector<8x32xf32>
    %70 = arith.subf %64, %69 : vector<8x32xf32>
    %71 = arith.mulf %70, %70 : vector<8x32xf32>
    %cst_22 = arith.constant dense<0.000000e+00> : vector<8xf32>
    %72 = vector.multi_reduction <add>, %71, %cst_22 [1] : vector<8x32xf32> to vector<8xf32>
    %73 = vector.shape_cast %72 : vector<8xf32> to vector<8x1xf32>
    %cst_23 = arith.constant 3.200000e+01 : f32
    %74 = vector.broadcast %cst_23 : f32 to vector<8x1xf32>
    %75 = arith.divf %73, %74 : vector<8x1xf32>
    %cst_24 = arith.constant 9.99999974E-6 : f32
    %76 = vector.broadcast %cst_24 : f32 to vector<8x1xf32>
    %77 = arith.addf %75, %76 : vector<8x1xf32>
    %78 = math.rsqrt %77 : vector<8x1xf32>
    %79 = vector.broadcast %78 : vector<8x1xf32> to vector<8x32xf32>
    %80 = arith.mulf %70, %79 : vector<8x32xf32>
    %81 = vector.broadcast %8 : vector<1x32xf32> to vector<8x32xf32>
    %82 = arith.mulf %80, %81 : vector<8x32xf32>
    %83 = vector.broadcast %9 : vector<1x32xf32> to vector<8x32xf32>
    %84 = arith.addf %82, %83 : vector<8x32xf32>
    %85 = arith.truncf %84 : vector<8x32xf32> to vector<8x32xbf16>
    %c0_25 = arith.constant 0 : index
    %c0_26 = arith.constant 0 : index
    %86 = vector.load %arg4[%c0_25, %c0_26] : memref<32x8xbf16, #tpu.memory_space<vmem>>, vector<32x8xbf16>
    %cst_27 = arith.constant dense<0.000000e+00> : vector<8x8xf32>
    %87 = tpu.matmul %85, %86, %cst_27 {dimension_numbers = #tpu.dot_dimension_numbers<[1], [0], [0], [1], [0, 0, 1, 1], [], []>} : vector<8x32xbf16>, vector<32x8xbf16>, vector<8x8xf32> -> vector<8x8xf32>
    %88 = vector.broadcast %10 : vector<1x8xf32> to vector<8x8xf32>
    %89 = arith.addf %87, %88 : vector<8x8xf32>
    %90 = arith.negf %89 : vector<8x8xf32>
    %91 = math.exp %90 : vector<8x8xf32>
    %cst_28 = arith.constant 1.000000e+00 : f32
    %92 = vector.broadcast %cst_28 : f32 to vector<8x8xf32>
    %93 = arith.addf %92, %91 : vector<8x8xf32>
    %94 = arith.divf %92, %93 : vector<8x8xf32>
    %c0_29 = arith.constant 0 : index
    %c0_30 = arith.constant 0 : index
    %95 = vector.load %arg6[%c0_29, %c0_30] : memref<8x8xf32, #tpu.memory_space<vmem>>, vector<8x8xf32>
    tpu.vector_store %arg6[%c0_29, %c0_30], %94 {strides = array<i32>} : memref<8x8xf32, #tpu.memory_space<vmem>>, vector<8x8xf32>,
    return
  }
  func.func @transform_0(%arg0: i32) -> (i32, i32) {
    %c0_i32 = arith.constant 0 : i32
    %c0_i32_0 = arith.constant 0 : i32
    return %arg0, %c0_i32 : i32, i32
  }
  func.func @transform_1(%arg0: i32) -> (i32, i32) {
    %c0_i32 = arith.constant 0 : i32
    %c0_i32_0 = arith.constant 0 : i32
    %c0_i32_1 = arith.constant 0 : i32
    return %c0_i32, %c0_i32_0 : i32, i32
  }
  func.func @transform_2(%arg0: i32) -> (i32, i32) {
    %c0_i32 = arith.constant 0 : i32
    %c0_i32_0 = arith.constant 0 : i32
    %c0_i32_1 = arith.constant 0 : i32
    return %c0_i32, %c0_i32_0 : i32, i32
  }
  func.func @transform_3(%arg0: i32) -> (i32, i32) {
    %c0_i32 = arith.constant 0 : i32
    %c0_i32_0 = arith.constant 0 : i32
    %c0_i32_1 = arith.constant 0 : i32
    return %c0_i32, %c0_i32_0 : i32, i32
  }
  func.func @transform_4(%arg0: i32) -> (i32, i32) {
    %c0_i32 = arith.constant 0 : i32
    %c0_i32_0 = arith.constant 0 : i32
    %c0_i32_1 = arith.constant 0 : i32
    return %c0_i32, %c0_i32_0 : i32, i32
  }
  func.func @transform_5(%arg0: i32) -> (i32, i32) {
    %c0_i32 = arith.constant 0 : i32
    %c0_i32_0 = arith.constant 0 : i32
    return %arg0, %c0_i32 : i32, i32
  }
}

</mosaic_0001>

<llo_original>
// kernel: tpu_custom_call.1
$region0: #{tpu_custom_call.1}
  #allocation0 [shape = 'u32[]', space=smem, size = 0x4, offset = 0x4, fixed_abs, tag = 'smem constant byte address 0x4 - core index']
  #allocation1 [shape = 'u32[144,128]{1,0:T(1,128)}', space=vmem, size = 0x12000, scoped, tag = 'internal scratch']
  %s0 = inlined_call_operand.hbm [shape: f32[8,16], index: 0, kind: input, shape index: {}]
  %s1 = inlined_call_operand.hbm [shape: bf16[16,32], index: 1, kind: input, shape index: {}]
  %s2 = inlined_call_operand.vmem [shape: bf16[32,32], index: 2, kind: input, shape index: {}]
  %s3 = inlined_call_operand.vmem [shape: bf16[32,8], index: 3, kind: input, shape index: {}]
  %s4 = inlined_call_operand.vmem [shape: f32[16,32], index: 4, kind: input, shape index: {}]
  %s5 = inlined_call_operand.hbm [shape: f32[8,8], index: 5, kind: output, shape index: {}]
  %s6 = sld [smem:[#allocation0]]
  $region38: #{tpu_custom_call.1} parent=0
    _
  %s8 = ssub.s32 1, %s6
  %s9 = scalar_select 0, %s8, %s6
  $region1: #{tpu_custom_call.1} parent=0
    #allocation2 [shape = 'u8[4096]{0}', space=vmem, size = 0x1000, scoped, tag = 'input window, operand 0, single buffered']
    #allocation3 [shape = 's32[1]{0}', space=sflag, size = 0x4, scoped, tag = 'scoped memory for tpu_custom_call.1']
    #allocation4 [shape = 's32[1]{0}', space=sflag, size = 0x4, scoped, tag = 'scoped memory for tpu_custom_call.1']
    #allocation5 [shape = 'u8[4096]{0}', space=vmem, size = 0x1000, scoped, tag = 'input window, operand 1, single buffered']
    #allocation6 [shape = 's32[1]{0}', space=sflag, size = 0x4, scoped, tag = 'scoped memory for tpu_custom_call.1']
    #allocation7 [shape = 'u8[4096]{0}', space=vmem, size = 0x1000, scoped, tag = 'output window, operand 0, single buffered']
    %10 = vsyncpa [#allocation3], 0
    %11 = vsyncpa [#allocation6], 0
    %12 = vsyncpa [#allocation4], 0
    // Predicated region
    $region2: #{tpu_custom_call.1} parent=1 // pred_check
      _
    $region3: #{tpu_custom_call.1} parent=1 // pred_check_branch
      %14 = sbr.rel (0) target = $region5
    $region4: #{tpu_custom_call.1} parent=1 // pred_region
      %s16 = ssub.s32 128, 128
      %17 = vsyncadd [#allocation3], %s16
      %s19 = sshll.u32 [#allocation2], 4
      %s20 = int_to_ptr.vmem [resolvable:$true] %s19
      %22 = dma.hbm_to_vmem [thread:$0]  %s0, 128, %s20, [#allocation3]
    $region5: #{tpu_custom_call.1} parent=1 // pred_fallthru
      _
    // Predicated region
    $region6: #{tpu_custom_call.1} parent=1 // pred_check
      _
    $region7: #{tpu_custom_call.1} parent=1 // pred_check_branch
      %24 = sbr.rel (0) target = $region9
    $region8: #{tpu_custom_call.1} parent=1 // pred_region
      %s26 = ssub.s32 128, 128
      %27 = vsyncadd [#allocation6], %s26
      %s28 = sshll.u32 [#allocation5], 4
      %s29 = int_to_ptr.vmem [resolvable:$true] %s28
      %34 = dma.hbm_to_vmem [thread:$0]  %s1, 128, %s29, [#allocation6], 64, 64, 4
    $region9: #{tpu_custom_call.1} parent=1 // pred_fallthru
      _
    // Predicated region
    $region10: #{tpu_custom_call.1} parent=1 // pred_check
      _
    $region11: #{tpu_custom_call.1} parent=1 // pred_check_branch
      %36 = sbr.rel (0) target = $region13
    $region12: #{tpu_custom_call.1} parent=1 // pred_region
      _
    $region13: #{tpu_custom_call.1} parent=1 // pred_fallthru
      _
    // Predicated region
    $region14: #{tpu_custom_call.1} parent=1 // pred_check
      _
    $region15: #{tpu_custom_call.1} parent=1 // pred_check_branch
      %38 = sbr.rel (0) target = $region17
    $region16: #{tpu_custom_call.1} parent=1 // pred_region
      _
    $region17: #{tpu_custom_call.1} parent=1 // pred_fallthru
      _
    // Predicated region
    $region18: #{tpu_custom_call.1} parent=1 // pred_check
      _
    $region19: #{tpu_custom_call.1} parent=1 // pred_check_branch
      %40 = sbr.rel (0) target = $region21
    $region20: #{tpu_custom_call.1} parent=1 // pred_region
      _
    $region21: #{tpu_custom_call.1} parent=1 // pred_fallthru
      _
    // Predicated region
    $region22: #{tpu_custom_call.1} parent=1 // pred_check
      _
    $region23: #{tpu_custom_call.1} parent=1 // pred_check_branch
      %42 = sbr.rel (0) target = $region25
    $region24: #{tpu_custom_call.1} parent=1 // pred_region
      %43 = dma.done [#allocation3], 128
    $region25: #{tpu_custom_call.1} parent=1 // pred_fallthru
      _
    // Predicated region
    $region26: #{tpu_custom_call.1} parent=1 // pred_check
      _
    $region27: #{tpu_custom_call.1} parent=1 // pred_check_branch
      %45 = sbr.rel (0) target = $region29
    $region28: #{tpu_custom_call.1} parent=1 // pred_region
      %46 = dma.done [#allocation6], 128
    $region29: #{tpu_custom_call.1} parent=1 // pred_fallthru
      _
    %v48 = vld [vmem:[#allocation2] sm:$0xff]
    %v49 = vld [vmem:[%s4] sm:$0xff]
    %v50 = vld [vmem:[%s4 + $0x8] sm:$0xff]
    %vm51 = vcmask 130048
    %v52 = vsel %vm51, %v48, 0.0
    %53 = vadd.xlane.f32.xlu0 %v52
    %v54 = vpop.xlane.xlu0 %53
    %v55 = vrcp.pop 16.0
    %v56 = vmul.f32 %v54, %v55
    %v57 = vsub.f32 %v48, %v56
    %v58 = vmul.f32 %v57, %v57
    %v59 = vsel %vm51, %v58, 0.0
    %60 = vadd.xlane.f32.xlu0 %v59
    %v61 = vpop.xlane.xlu0 %60
    %v62 = vmul.f32 %v61, %v55
    %v63 = vadd.f32 %v62, 1e-05
    %v64 = vrsqrt.pop %v63
    %v65 = vmul.f32 %v57, %v64
    %v66 = vlaneseq
    %v67 = vshrl.u32 %v66, 7
    %v68 = vsub.s32 0, %v67
    %v69 = vrot.slane %v49, %v68
    %v70 = vmul.f32 %v65, %v69
    %v71 = vlaneseq
    %v72 = vshrl.u32 %v71, 7
    %v73 = vsub.s32 1, %v72
    %v74 = vrot.slane %v49, %v73
    %v75 = vadd.f32 %v70, %v74
    %v76 = vpack.c.bf16 %v75, %v75
    %v77 = vld [vmem:[#allocation5] sm:$0xf]
    %v78 = vld [vmem:[#allocation5 + $0x4] sm:$0xf]
    %v79 = vlaneseq
    %v80 = vshrl.u32 %v79, 7
    %v81 = vsub.s32 2, %v80
    %v82 = vrot.slane %v49, %v81
    %v85 = vunpack.c.l.b16 %v77
    %v86 = vunpack.c.l.b16 %v78
    %v87 = vpack.c.b16 %v86, %v85
    %v90 = vsel %vm51, %v76, 0
    %92 = vmatprep.subr.bf16.mxu0 0
    %93 = vmatpush1.bf16.msra.mxu0 %v87
    %94 = vmatprep.subr.bf16.mxu0 0
    %95 = vmatpush1.bf16.msra.mxu0 0
    %96 = vmatprep.subr.bf16.mxu0 0
    %97 = vmatpush1.bf16.msra.mxu0 0
    %98 = vmatprep.subr.bf16.mxu0 0
    %99 = vmatpush1.bf16.msra.mxu0 0
    %100 = vmatprep.subr.bf16.mxu0 0
    %101 = vmatpush1.bf16.msra.mxu0 0
    %102 = vmatprep.subr.bf16.mxu0 0
    %103 = vmatpush1.bf16.msra.mxu0 0
    %104 = vmatprep.subr.bf16.mxu0 0
    %105 = vmatpush1.bf16.msra.mxu0 0
    %106 = vmatprep.subr.bf16.mxu0 0
    %107 = vmatpush1.bf16.msra.mxu0 0
    %108 = vmatprep.subr.bf16.mxu0 0
    %109 = vmatpush1.bf16.msra.mxu0 0
    %110 = vmatprep.subr.bf16.mxu0 0
    %111 = vmatpush1.bf16.msra.mxu0 0
    %112 = vmatprep.subr.bf16.mxu0 0
    %113 = vmatpush1.bf16.msra.mxu0 0
    %114 = vmatprep.subr.bf16.mxu0 0
    %115 = vmatpush1.bf16.msra.mxu0 0
    %116 = vmatprep.subr.bf16.mxu0 0
    %117 = vmatpush1.bf16.msra.mxu0 0
    %118 = vmatprep.subr.bf16.mxu0 0
    %119 = vmatpush1.bf16.msra.mxu0 0
    %120 = vmatprep.subr.bf16.mxu0 0
    %121 = vmatpush1.bf16.msra.mxu0 0
    %122 = vmatprep.subr.bf16.mxu0 0
    %123 = vmatpush1.bf16.msra.mxu0 0
    %124 = vmatprep.mubr.bf16.mxu0 0
    %125 = vmatmul.mubr.bf16.gmra.mrb[0].mxu0 %v90
    %v126 = vpop.f32.mrb[0].mxu0
    %v127 = vadd.f32 %v82, %v126
    %v128 = vpop.f32.mrb[0].mxu0
    %v129 = vpop.f32.mrb[0].mxu0
    %v130 = vpop.f32.mrb[0].mxu0
    %131 = vdwg.mxu0
    %v132 = vmax.f32 %v127, 0.0
    %vm133 = vcmask 261120
    %v134 = vsel %vm133, %v132, 0.0
    %135 = vadd.xlane.f32.xlu0 %v134
    %v136 = vpop.xlane.xlu0 %135
    %v137 = vrcp.pop 32.0
    %v138 = vmul.f32 %v136, %v137
    %v139 = vsub.f32 %v132, %v138
    %v140 = vmul.f32 %v139, %v139
    %v141 = vsel %vm133, %v140, 0.0
    %142 = vadd.xlane.f32.xlu0 %v141
    %v143 = vpop.xlane.xlu0 %142
    %v144 = vmul.f32 %v143, %v137
    %v145 = vadd.f32 %v144, 1e-05
    %v146 = vrsqrt.pop %v145
    %v147 = vmul.f32 %v139, %v146
    %v148 = vlaneseq
    %v149 = vshrl.u32 %v148, 7
    %v150 = vsub.s32 3, %v149
    %v151 = vrot.slane %v49, %v150
    %v152 = vmul.f32 %v147, %v151
    %v153 = vlaneseq
    %v154 = vshrl.u32 %v153, 7
    %v155 = vsub.s32 4, %v154
    %v156 = vrot.slane %v49, %v155
    %v157 = vadd.f32 %v152, %v156
    %v158 = vpack.c.bf16 %v157, %v157
    %v159 = vld [vmem:[%s2] sm:$0xf]
    %v160 = vld [vmem:[%s2 + $0x4] sm:$0xf]
    %v161 = vld [vmem:[%s2 + $0x8] sm:$0xf]
    %v162 = vld [vmem:[%s2 + $0xc] sm:$0xf]
    %v163 = vlaneseq
    %v164 = vshrl.u32 %v163, 7
    %v165 = vsub.s32 5, %v164
    %v166 = vrot.slane %v49, %v165
    %v171 = vunpack.c.l.b16 %v159
    %v172 = vunpack.c.l.b16 %v160
    %v173 = vunpack.c.l.b16 %v161
    %v174 = vunpack.c.l.b16 %v162
    %v175 = vpack.c.b16 %v172, %v171
    %v176 = vpack.c.b16 %v174, %v173
    %v180 = vsel %vm133, %v158, 0
    %182 = vmatprep.subr.bf16.mxu0 0
    %183 = vmatpush1.bf16.msra.mxu0 %v175
    %184 = vmatprep.subr.bf16.mxu0 0
    %185 = vmatpush1.bf16.msra.mxu0 %v176
    %186 = vmatprep.subr.bf16.mxu0 0
    %187 = vmatpush1.bf16.msra.mxu0 0
    %188 = vmatprep.subr.bf16.mxu0 0
    %189 = vmatpush1.bf16.msra.mxu0 0
    %190 = vmatprep.subr.bf16.mxu0 0
    %191 = vmatpush1.bf16.msra.mxu0 0
    %192 = vmatprep.subr.bf16.mxu0 0
    %193 = vmatpush1.bf16.msra.mxu0 0
    %194 = vmatprep.subr.bf16.mxu0 0
    %195 = vmatpush1.bf16.msra.mxu0 0
    %196 = vmatprep.subr.bf16.mxu0 0
    %197 = vmatpush1.bf16.msra.mxu0 0
    %198 = vmatprep.subr.bf16.mxu0 0
    %199 = vmatpush1.bf16.msra.mxu0 0
    %200 = vmatprep.subr.bf16.mxu0 0
    %201 = vmatpush1.bf16.msra.mxu0 0
    %202 = vmatprep.subr.bf16.mxu0 0
    %203 = vmatpush1.bf16.msra.mxu0 0
    %204 = vmatprep.subr.bf16.mxu0 0
    %205 = vmatpush1.bf16.msra.mxu0 0
    %206 = vmatprep.subr.bf16.mxu0 0
    %207 = vmatpush1.bf16.msra.mxu0 0
    %208 = vmatprep.subr.bf16.mxu0 0
    %209 = vmatpush1.bf16.msra.mxu0 0
    %210 = vmatprep.subr.bf16.mxu0 0
    %211 = vmatpush1.bf16.msra.mxu0 0
    %212 = vmatprep.subr.bf16.mxu0 0
    %213 = vmatpush1.bf16.msra.mxu0 0
    %214 = vmatprep.mubr.bf16.mxu0 0
    %215 = vmatmul.mubr.bf16.gmra.mrb[0].mxu0 %v180
    %v216 = vpop.f32.mrb[0].mxu0
    %v217 = vadd.f32 %v166, %v216
    %v218 = vpop.f32.mrb[0].mxu0
    %v219 = vpop.f32.mrb[0].mxu0
    %v220 = vpop.f32.mrb[0].mxu0
    %221 = vdwg.mxu0
    %v222 = vmax.f32 %v217, 0.0
    %v223 = vsel %vm133, %v222, 0.0
    %224 = vadd.xlane.f32.xlu0 %v223
    %v225 = vpop.xlane.xlu0 %224
    %v226 = vmul.f32 %v225, %v137
    %v227 = vsub.f32 %v222, %v226
    %v228 = vmul.f32 %v227, %v227
    %v229 = vsel %vm133, %v228, 0.0
    %230 = vadd.xlane.f32.xlu0 %v229
    %v231 = vpop.xlane.xlu0 %230
    %v232 = vmul.f32 %v231, %v137
    %v233 = vadd.f32 %v232, 1e-05
    %v234 = vrsqrt.pop %v233
    %v235 = vmul.f32 %v227, %v234
    %v236 = vlaneseq
    %v237 = vshrl.u32 %v236, 7
    %v238 = vsub.s32 6, %v237
    %v239 = vrot.slane %v49, %v238
    %v240 = vmul.f32 %v235, %v239
    %v241 = vlaneseq
    %v242 = vshrl.u32 %v241, 7
    %v243 = vsub.s32 7, %v242
    %v244 = vrot.slane %v49, %v243
    %v245 = vadd.f32 %v240, %v244
    %v246 = vpack.c.bf16 %v245, %v245
    %v247 = vld [vmem:[%s3] sm:$0xf]
    %v248 = vld [vmem:[%s3 + $0x4] sm:$0xf]
    %v249 = vld [vmem:[%s3 + $0x8] sm:$0xf]
    %v250 = vld [vmem:[%s3 + $0xc] sm:$0xf]
    %v251 = vlaneseq
    %v252 = vshrl.u32 %v251, 7
    %v253 = vsub.s32 0, %v252
    %v254 = vrot.slane %v50, %v253
    %v259 = vunpack.c.l.b16 %v247
    %v260 = vunpack.c.l.b16 %v248
    %v261 = vunpack.c.l.b16 %v249
    %v262 = vunpack.c.l.b16 %v250
    %v263 = vpack.c.b16 %v260, %v259
    %v264 = vpack.c.b16 %v262, %v261
    %v268 = vsel %vm133, %v246, 0
    %270 = vmatprep.subr.bf16.mxu0 0
    %271 = vmatpush1.bf16.msra.mxu0 %v263
    %272 = vmatprep.subr.bf16.mxu0 0
    %273 = vmatpush1.bf16.msra.mxu0 %v264
    %274 = vmatprep.subr.bf16.mxu0 0
    %275 = vmatpush1.bf16.msra.mxu0 0
    %276 = vmatprep.subr.bf16.mxu0 0
    %277 = vmatpush1.bf16.msra.mxu0 0
    %278 = vmatprep.subr.bf16.mxu0 0
    %279 = vmatpush1.bf16.msra.mxu0 0
    %280 = vmatprep.subr.bf16.mxu0 0
    %281 = vmatpush1.bf16.msra.mxu0 0
    %282 = vmatprep.subr.bf16.mxu0 0
    %283 = vmatpush1.bf16.msra.mxu0 0
    %284 = vmatprep.subr.bf16.mxu0 0
    %285 = vmatpush1.bf16.msra.mxu0 0
    %286 = vmatprep.subr.bf16.mxu0 0
    %287 = vmatpush1.bf16.msra.mxu0 0
    %288 = vmatprep.subr.bf16.mxu0 0
    %289 = vmatpush1.bf16.msra.mxu0 0
    %290 = vmatprep.subr.bf16.mxu0 0
    %291 = vmatpush1.bf16.msra.mxu0 0
    %292 = vmatprep.subr.bf16.mxu0 0
    %293 = vmatpush1.bf16.msra.mxu0 0
    %294 = vmatprep.subr.bf16.mxu0 0
    %295 = vmatpush1.bf16.msra.mxu0 0
    %296 = vmatprep.subr.bf16.mxu0 0
    %297 = vmatpush1.bf16.msra.mxu0 0
    %298 = vmatprep.subr.bf16.mxu0 0
    %299 = vmatpush1.bf16.msra.mxu0 0
    %300 = vmatprep.subr.bf16.mxu0 0
    %301 = vmatpush1.bf16.msra.mxu0 0
    %302 = vmatprep.mubr.bf16.mxu0 0
    %303 = vmatmul.mubr.bf16.gmra.mrb[0].mxu0 %v268
    %v304 = vpop.f32.mrb[0].mxu0
    %v305 = vadd.f32 %v254, %v304
    %v306 = vpop.f32.mrb[0].mxu0
    %v307 = vpop.f32.mrb[0].mxu0
    %v308 = vpop.f32.mrb[0].mxu0
    %309 = vdwg.mxu0
    %v310 = vxor.u32 %v305, 2147483648
    %v311 = vmul.f32 %v310, 1.442695
    %v312 = vpow.pop %v311
    %v313 = vadd.f32 %v312, 1.0
    %v314 = vrcp.pop %v313
    %v315 = vmul.f32 1.0, %v314
    %vm316 = vcmask 64512
    %317 = vst.msk [vmem:[#allocation7] sm:$0xff] %vm316, %v315
    // Predicated region
    $region30: #{tpu_custom_call.1} parent=1 // pred_check
      _
    $region31: #{tpu_custom_call.1} parent=1 // pred_check_branch
      %319 = sbr.rel (0) target = $region33
    $region32: #{tpu_custom_call.1} parent=1 // pred_region
      %s321 = ssub.s32 128, 128
      %322 = vsyncadd [#allocation4], %s321
      %s324 = sshll.u32 [#allocation7], 4
      %s325 = int_to_ptr.vmem [resolvable:$true] %s324
      %327 = dma.vmem_to_hbm [thread:$0]  %s325, 128, %s5, [#allocation4]
    $region33: #{tpu_custom_call.1} parent=1 // pred_fallthru
      _
    // Predicated region
    $region34: #{tpu_custom_call.1} parent=1 // pred_check
      _
    $region35: #{tpu_custom_call.1} parent=1 // pred_check_branch
      %329 = sbr.rel (0) target = $region37
    $region36: #{tpu_custom_call.1} parent=1 // pred_region
      %330 = dma.done [#allocation4], 128
    $region37: #{tpu_custom_call.1} parent=1 // pred_fallthru
      _
    %331 = vsyncpa [#allocation3], 1
    %332 = vsyncpa [#allocation6], 1
    %333 = vsyncpa [#allocation4], 1

</llo_original>
